<compile_context>
chip_gen: v6e
topology: v6e:2x2x1
jax: 0.10.0
libtpu: 0.0.40
codegen_flags: <defaults>
</compile_context>

<pallas_src>
import jax
import jax.numpy as jnp
from jax.experimental import pallas as pl
from jax.experimental.pallas import tpu as pltpu

SMALL_B = 2048  # below this, grid-less whole-array path (fits VMEM easily)


def matmul_kernel(x_ref, w_ref, o_ref):
    # One MXU matmul per block, f32 accumulation.
    o_ref[...] = jnp.dot(
        x_ref[...], w_ref[...], preferred_element_type=jnp.float32
    ).astype(o_ref.dtype)


def _pack_factor():
    # v6e/v7x MXUs are 256-deep -> pack 8 (K=256); v4/v5 are 128 -> pack 4.
    try:
        kind = jax.devices()[0].device_kind.lower()
    except Exception:
        return 8
    if "v4" in kind or "v5" in kind:
        return 4
    return 8


def _forward_small(x, W):
    # Grid-less call: whole arrays pinned in VMEM, single kernel invocation.
    B, K = x.shape
    _, N = W.shape
    return pl.pallas_call(
        matmul_kernel,
        out_shape=jax.ShapeDtypeStruct((B, N), x.dtype),
        in_specs=[
            pl.BlockSpec(memory_space=pltpu.MemorySpace.VMEM),
            pl.BlockSpec(memory_space=pltpu.MemorySpace.VMEM),
        ],
        out_specs=pl.BlockSpec(memory_space=pltpu.MemorySpace.VMEM),
    )(x, W)


def _forward_tiled_packed(x, W, pack):
    # Streaming path for large batch.  Requires B % pack == 0.
    B, K = x.shape
    _, N = W.shape
    Bp = B // pack
    Kp = K * pack
    Np = N * pack

    # Free reshape of contiguous row-major data: lane-dense x stream.
    xp = x.reshape(Bp, Kp)
    # Block-diagonal W so the packed matmul is bit-exact w.r.t. x @ W.
    Wp = jnp.kron(jnp.eye(pack, dtype=W.dtype), W)  # (Kp, Np)

    # Tile sizing: ~4 MiB (1M f32 elems) of packed x per block, but keep the
    # grid at >= 2 steps so both v7x TensorCores get work.
    tile_max = max(8, ((1 << 20) // Kp) // 8 * 8)
    half = (pl.cdiv(Bp, 2) + 7) // 8 * 8
    tile = max(8, min(tile_max, half))
    grid = (pl.cdiv(Bp, tile),)

    cost = pl.CostEstimate(
        flops=2 * B * K * N,
        transcendentals=0,
        bytes_accessed=(B * K + K * N + B * N) * x.dtype.itemsize,
    )

    out_p = pl.pallas_call(
        matmul_kernel,
        out_shape=jax.ShapeDtypeStruct((Bp, Np), x.dtype),
        grid=grid,
        in_specs=[
            pl.BlockSpec((tile, Kp), lambda i: (i, 0)),
            pl.BlockSpec((Kp, Np), lambda i: (0, 0)),  # W resident, reused
        ],
        out_specs=pl.BlockSpec((tile, Np), lambda i: (i, 0)),
        compiler_params=pltpu.CompilerParams(
            dimension_semantics=("parallel",),
            vmem_limit_bytes=48 * 1024 * 1024,
        ),
        cost_estimate=cost,
    )(xp, Wp)
    # (Bp, pack*N) -> (B, N) is again a free contiguous reshape.
    return out_p.reshape(B, N)


def forward(x, W):
    B, K = x.shape
    K2, N = W.shape
    assert K == K2
    if B < SMALL_B:
        return _forward_small(x, W)
    pack = _pack_factor()
    rem = B % pack
    if rem == 0:
        return _forward_tiled_packed(x, W, pack)
    # Bulk rows through the fast packed path, tiny tail through the small path.
    main = _forward_tiled_packed(x[: B - rem], W, pack)
    tail = _forward_small(x[B - rem:], W)
    return jnp.concatenate([main, tail], axis=0)


if __name__ == "__main__":
    key = jax.random.PRNGKey(0)
    kx, kw = jax.random.split(key)
    # Module shapes: x [batch, 32], W [32, 2].
    x = jax.random.normal(kx, (8, 32), dtype=jnp.float32)
    W = jax.random.normal(kw, (32, 2), dtype=jnp.float32)

    out = forward(x, W)
    jax.block_until_ready(out)

    ref = x @ W
    assert out.shape == (8, 2)
    assert jnp.allclose(out, ref, atol=1e-5, rtol=1e-5)

    # Large batch: packed, tiled, parallel-grid path.
    xb = jax.random.normal(kx, (8192, 32), dtype=jnp.float32)
    outb = forward(xb, W)
    jax.block_until_ready(outb)
    assert jnp.allclose(outb, xb @ W, atol=1e-4, rtol=1e-5)

    # Ragged large batch: exercises cdiv grid + remainder handling.
    xr = jax.random.normal(kw, (4101, 32), dtype=jnp.float32)
    outr = forward(xr, W)
    jax.block_until_ready(outr)
    assert jnp.allclose(outr, xr @ W, atol=1e-4, rtol=1e-5)

    print("KERNEL_OK")
</pallas_src>

<mosaic_0001>
module attributes {stable_mosaic.version = 11 : i64} {
  func.func @matmul_kernel(%arg0: memref<8x32xf32, #tpu.memory_space<vmem>>, %arg1: memref<32x2xf32, #tpu.memory_space<vmem>>, %arg2: memref<8x2xf32, #tpu.memory_space<vmem>>) attributes {dimension_semantics = [], scalar_prefetch = 0 : i64, scratch_operands = 0 : i64, tpu.core_type = #tpu.core_type<tc>} {
    %c0 = arith.constant 0 : index
    %c0_0 = arith.constant 0 : index
    %0 = vector.load %arg0[%c0, %c0_0] : memref<8x32xf32, #tpu.memory_space<vmem>>, vector<8x32xf32>
    %c0_1 = arith.constant 0 : index
    %c0_2 = arith.constant 0 : index
    %1 = vector.load %arg1[%c0_1, %c0_2] : memref<32x2xf32, #tpu.memory_space<vmem>>, vector<32x2xf32>
    %cst = arith.constant dense<0.000000e+00> : vector<8x2xf32>
    %2 = tpu.matmul %0, %1, %cst {dimension_numbers = #tpu.dot_dimension_numbers<[1], [0], [0], [1], [0, 0, 1, 1], [], []>} : vector<8x32xf32>, vector<32x2xf32>, vector<8x2xf32> -> vector<8x2xf32>
    %c0_3 = arith.constant 0 : index
    %c0_4 = arith.constant 0 : index
    %3 = vector.load %arg2[%c0_3, %c0_4] : memref<8x2xf32, #tpu.memory_space<vmem>>, vector<8x2xf32>
    tpu.vector_store %arg2[%c0_3, %c0_4], %2 {strides = array<i32>} : memref<8x2xf32, #tpu.memory_space<vmem>>, vector<8x2xf32>,
    return
  }
}

</mosaic_0001>

<llo_original>
// kernel: tpu_custom_call.1
$region0: #{tpu_custom_call.1}
  #allocation0 [shape = 'u32[]', space=smem, size = 0x4, offset = 0x4, fixed_abs, tag = 'smem constant byte address 0x4 - core index']
  #allocation1 [shape = 'u32[144,128]{1,0:T(1,128)}', space=vmem, size = 0x12000, scoped, tag = 'internal scratch']
  %s0 = inlined_call_operand.vmem [shape: f32[8,32], index: 0, kind: input, shape index: {}]
  %s1 = inlined_call_operand.vmem [shape: f32[32,2], index: 1, kind: input, shape index: {}]
  %s2 = inlined_call_operand.vmem [shape: f32[8,2], index: 2, kind: output, shape index: {}]
  %s3 = sld [smem:[#allocation0]]
  $region18: #{tpu_custom_call.1} parent=0
    _
  %s5 = ssub.s32 1, %s3
  %s6 = scalar_select 0, %s5, %s3
  // Predicated region
  $region2: #{tpu_custom_call.1} parent=0 // pred_check
    _
  $region3: #{tpu_custom_call.1} parent=0 // pred_check_branch
    %8 = sbr.rel (0) target = $region5
  $region4: #{tpu_custom_call.1} parent=0 // pred_region
    _
  $region5: #{tpu_custom_call.1} parent=0 // pred_fallthru
    _
  // Predicated region
  $region6: #{tpu_custom_call.1} parent=0 // pred_check
    _
  $region7: #{tpu_custom_call.1} parent=0 // pred_check_branch
    %10 = sbr.rel (0) target = $region9
  $region8: #{tpu_custom_call.1} parent=0 // pred_region
    _
  $region9: #{tpu_custom_call.1} parent=0 // pred_fallthru
    _
  %v11 = vld [vmem:[%s0] sm:$0xff]
  %v12 = vld [vmem:[%s1] sm:$0xff]
  %v13 = vld [vmem:[%s1 + $0x8] sm:$0xff]
  %v14 = vld [vmem:[%s1 + $0x10] sm:$0xff]
  %v15 = vld [vmem:[%s1 + $0x18] sm:$0xff]
  %vm16 = vcmask 261120
  %v18 = vsel %vm16, %v11, 0
  %20 = vmatprep.subr.mxu0 0.0
  %21 = vmatpush1.msra.mxu0 0.0
  %22 = vmatprep.subr.mxu0 0.0
  %23 = vmatpush1.msra.mxu0 0.0
  %24 = vmatprep.subr.mxu0 0.0
  %25 = vmatpush1.msra.mxu0 0.0
  %26 = vmatprep.subr.mxu0 0.0
  %27 = vmatpush1.msra.mxu0 0.0
  %28 = vmatprep.subr.mxu0 0.0
  %29 = vmatpush1.msra.mxu0 0.0
  %30 = vmatprep.subr.mxu0 0.0
  %31 = vmatpush1.msra.mxu0 0.0
  %32 = vmatprep.subr.mxu0 0.0
  %33 = vmatpush1.msra.mxu0 0.0
  %34 = vmatprep.subr.mxu0 0.0
  %35 = vmatpush1.msra.mxu0 0.0
  %36 = vmatprep.subr.mxu0 0.0
  %37 = vmatpush1.msra.mxu0 0.0
  %38 = vmatprep.subr.mxu0 0.0
  %39 = vmatpush1.msra.mxu0 0.0
  %40 = vmatprep.subr.mxu0 0.0
  %41 = vmatpush1.msra.mxu0 0.0
  %42 = vmatprep.subr.mxu0 0.0
  %43 = vmatpush1.msra.mxu0 0.0
  %44 = vmatprep.subr.mxu0 0.0
  %45 = vmatpush1.msra.mxu0 %v15
  %46 = vmatprep.subr.mxu0 0.0
  %47 = vmatpush1.msra.mxu0 %v14
  %48 = vmatprep.subr.mxu0 0.0
  %49 = vmatpush1.msra.mxu0 %v13
  %50 = vmatprep.subr.mxu0 0.0
  %51 = vmatpush1.msra.mxu0 %v12
  %52 = vmatprep.subr.mxu0 0.0
  %53 = vmatpush2.msra.mxu0 0.0
  %54 = vmatprep.subr.mxu0 0.0
  %55 = vmatpush2.msra.mxu0 0.0
  %56 = vmatprep.subr.mxu0 0.0
  %57 = vmatpush2.msra.mxu0 0.0
  %58 = vmatprep.subr.mxu0 0.0
  %59 = vmatpush2.msra.mxu0 0.0
  %60 = vmatprep.subr.mxu0 0.0
  %61 = vmatpush2.msra.mxu0 0.0
  %62 = vmatprep.subr.mxu0 0.0
  %63 = vmatpush2.msra.mxu0 0.0
  %64 = vmatprep.subr.mxu0 0.0
  %65 = vmatpush2.msra.mxu0 0.0
  %66 = vmatprep.subr.mxu0 0.0
  %67 = vmatpush2.msra.mxu0 0.0
  %68 = vmatprep.subr.mxu0 0.0
  %69 = vmatpush2.msra.mxu0 0.0
  %70 = vmatprep.subr.mxu0 0.0
  %71 = vmatpush2.msra.mxu0 0.0
  %72 = vmatprep.subr.mxu0 0.0
  %73 = vmatpush2.msra.mxu0 0.0
  %74 = vmatprep.subr.mxu0 0.0
  %75 = vmatpush2.msra.mxu0 0.0
  %76 = vmatprep.subr.mxu0 0.0
  %77 = vmatpush2.msra.mxu0 0.0
  %78 = vmatprep.subr.mxu0 0.0
  %79 = vmatpush2.msra.mxu0 0.0
  %80 = vmatprep.subr.mxu0 0.0
  %81 = vmatpush2.msra.mxu0 0.0
  %82 = vmatprep.subr.mxu0 0.0
  %83 = vmatpush2.msra.mxu0 0.0
  %84 = vmatprep.mubr.f32.mxu0 0.0
  %85 = vmatmul.mubr.f32.gmra.mxu0 %v18
  %v86 = vpop.f32.mrf.mxu0
  %v87 = vadd.f32 0.0, %v86
  %v88 = vpop.f32.mrf.mxu0
  %89 = vdwg.mxu0
  %vm90 = vcmask 15360
  %91 = vst.msk [vmem:[%s2] sm:$0xff] %vm90, %v87
  // Predicated region
  $region10: #{tpu_custom_call.1} parent=0 // pred_check
    _
  $region11: #{tpu_custom_call.1} parent=0 // pred_check_branch
    %93 = sbr.rel (0) target = $region13
  $region12: #{tpu_custom_call.1} parent=0 // pred_region
    _
  $region13: #{tpu_custom_call.1} parent=0 // pred_fallthru
    _
  // Predicated region
  $region14: #{tpu_custom_call.1} parent=0 // pred_check
    _
  $region15: #{tpu_custom_call.1} parent=0 // pred_check_branch
    %95 = sbr.rel (0) target = $region17
  $region16: #{tpu_custom_call.1} parent=0 // pred_region
    _
  $region17: #{tpu_custom_call.1} parent=0 // pred_fallthru
    _

</llo_original>
